<compile_context>
chip_gen: v6e
topology: v6e:2x2x1
jax: 0.10.0
libtpu: 0.0.40
codegen_flags: <defaults>
</compile_context>

<pallas_src>
import functools

import jax
import jax.numpy as jnp
from jax.experimental import pallas as pl
from jax.experimental.pallas import tpu as pltpu


PAD = 128  # every hidden / output width is lane-padded to 128


def _mlp_kernel(x_ref, w_ref, b_ref, o_ref, *, num_layers, compute_dtype):
    """Fused 5-layer MLP, all activations kept lane-padded to 128.

    x_ref: [Bt, 128]        (compute_dtype)
    w_ref: [L, 128, 128]    packed, pre-transposed, zero-padded weights
    b_ref: [L, 128]         packed, zero-padded biases (f32)
    o_ref: [Bt, 128]        f32, padded logits (valid in the first C lanes)
    """
    h = x_ref[...]                      # already compute_dtype (cast in wrapper)
    for i in range(num_layers):         # static unroll: 5 uniform MXU passes
        y = jnp.dot(h.astype(compute_dtype), w_ref[i],
                    preferred_element_type=jnp.float32)
        h = jnp.maximum(y + b_ref[i], 0.0)          # bias + ReLU in f32 (VPU)
    o_ref[...] = h.astype(o_ref.dtype)


def simple_mlp_nmpruning(x, params, *, compute_dtype=jnp.bfloat16, block_b=256):
    """x: [B, 128] f32.  params: list of (W, b) in PyTorch Linear layout (out, in)."""
    B, F = x.shape
    assert F == 128, f"expected 128 input features, got {F}"
    num_layers = len(params)
    num_classes = params[-1][0].shape[0]

    # ---- pack parameters: one weight slab + one bias slab (2 param DMAs) ----
    w_all = jnp.zeros((num_layers, PAD, PAD), dtype=compute_dtype)
    b_all = jnp.zeros((num_layers, PAD), dtype=jnp.float32)
    for i, (w, b) in enumerate(params):
        out_f, in_f = w.shape
        w_all = w_all.at[i, :in_f, :out_f].set(w.T.astype(compute_dtype))
        b_all = b_all.at[i, :out_f].set(b.astype(jnp.float32))

    # ---- batch tiling ----
    Bt = min(block_b, max(8, ((B + 7) // 8) * 8))
    Bt = ((Bt + 7) // 8) * 8
    n_blocks = pl.cdiv(B, Bt)
    B_pad = n_blocks * Bt

    x_p = x.astype(compute_dtype)
    if B_pad != B:
        x_p = jnp.pad(x_p, ((0, B_pad - B), (0, 0)))

    out_padded = pl.pallas_call(
        functools.partial(_mlp_kernel,
                          num_layers=num_layers,
                          compute_dtype=compute_dtype),
        out_shape=jax.ShapeDtypeStruct((B_pad, PAD), jnp.float32),
        grid=(n_blocks,),
        in_specs=[
            pl.BlockSpec((Bt, PAD), lambda i: (i, 0)),                 # x tile
            pl.BlockSpec((num_layers, PAD, PAD), lambda i: (0, 0, 0)),  # weights (resident)
            pl.BlockSpec((num_layers, PAD), lambda i: (0, 0)),          # biases (resident)
        ],
        out_specs=pl.BlockSpec((Bt, PAD), lambda i: (i, 0)),            # lane-dense output
        compiler_params=pltpu.CompilerParams(
            dimension_semantics=("parallel",)),
    )(x_p, w_all, b_all)

    return out_padded[:B, :num_classes]


def init_params(key, num_classes=3):
    """Mirror PyTorch nn.Linear default init: U(-1/sqrt(fan_in), 1/sqrt(fan_in))."""
    dims = [(128, 64), (64, 16), (16, 12), (12, 2), (2, num_classes)]
    params = []
    for fan_in, fan_out in dims:
        key, kw, kb = jax.random.split(key, 3)
        bound = 1.0 / (fan_in ** 0.5)
        w = jax.random.uniform(kw, (fan_out, fan_in), jnp.float32, -bound, bound)
        b = jax.random.uniform(kb, (fan_out,), jnp.float32, -bound, bound)
        params.append((w, b))
    return params


def reference_mlp_f32(x, params):
    """Pure f32 reference (module semantics)."""
    h = x
    for w, b in params:
        h = jnp.maximum(h @ w.T + b, 0.0)
    return h


def reference_mlp_matched(x, params, compute_dtype=jnp.bfloat16):
    """Reference with the same bf16-input / f32-accumulate matmul rounding."""
    h = x
    for w, b in params:
        y = jnp.dot(h.astype(compute_dtype), w.T.astype(compute_dtype),
                    preferred_element_type=jnp.float32)
        h = jnp.maximum(y + b.astype(jnp.float32), 0.0)
    return h


if __name__ == "__main__":
    key = jax.random.PRNGKey(0)
    key, kx = jax.random.split(key)

    batch = 8
    num_classes = 3
    x = jax.random.normal(kx, (batch, 128), jnp.float32)
    params = init_params(key, num_classes=num_classes)

    out = jax.block_until_ready(simple_mlp_nmpruning(x, params))

    ref_matched = reference_mlp_matched(x, params)   # same matmul precision
    ref_f32 = reference_mlp_f32(x, params)           # module semantics (f32)

    assert out.shape == (batch, num_classes), out.shape
    assert jnp.allclose(out, ref_matched, atol=1e-4, rtol=1e-4), \
        "mismatch vs precision-matched reference"
    assert jnp.allclose(out, ref_f32, atol=5e-2, rtol=5e-2), \
        "mismatch vs f32 reference"

    print("KERNEL_OK")
</pallas_src>

<mosaic_0001>
module attributes {stable_mosaic.version = 11 : i64} {
  func.func @_mlp_kernel(%arg0: i32, %arg1: memref<8x128xbf16, #tpu.memory_space<vmem>>, %arg2: memref<5x128x128xbf16, #tpu.memory_space<vmem>>, %arg3: memref<5x128xf32, #tpu.memory_space<vmem>>, %arg4: memref<8x128xf32, #tpu.memory_space<vmem>>) attributes {dimension_semantics = [#tpu.dimension_semantics<parallel>], iteration_bounds = array<i64: 1>, scalar_prefetch = 0 : i64, scratch_operands = 0 : i64, tpu.core_type = #tpu.core_type<tc>, window_params = [{transform_indices = @transform_0, window_bounds = array<i64: 8, 128>}, {pipeline_mode = #tpu.pipeline_mode<synchronous>, transform_indices = @transform_1, window_bounds = array<i64: 5, 128, 128>}, {pipeline_mode = #tpu.pipeline_mode<synchronous>, transform_indices = @transform_2, window_bounds = array<i64: 5, 128>}, {transform_indices = @transform_3, window_bounds = array<i64: 8, 128>}]} {
    %c0 = arith.constant 0 : index
    %c0_0 = arith.constant 0 : index
    %0 = vector.load %arg1[%c0, %c0_0] : memref<8x128xbf16, #tpu.memory_space<vmem>>, vector<8x128xbf16>
    %c0_1 = arith.constant 0 : index
    %c0_2 = arith.constant 0 : index
    %c0_3 = arith.constant 0 : index
    %1 = vector.load %arg2[%c0_1, %c0_2, %c0_3] : memref<5x128x128xbf16, #tpu.memory_space<vmem>>, vector<1x128x128xbf16>
    %2 = vector.shape_cast %1 : vector<1x128x128xbf16> to vector<128x128xbf16>
    %cst = arith.constant dense<0.000000e+00> : vector<8x128xf32>
    %3 = tpu.matmul %0, %2, %cst {dimension_numbers = #tpu.dot_dimension_numbers<[1], [0], [0], [1], [0, 0, 1, 1], [], []>} : vector<8x128xbf16>, vector<128x128xbf16>, vector<8x128xf32> -> vector<8x128xf32>
    %c0_4 = arith.constant 0 : index
    %c0_5 = arith.constant 0 : index
    %4 = vector.load %arg3[%c0_4, %c0_5] : memref<5x128xf32, #tpu.memory_space<vmem>>, vector<1x128xf32>
    %5 = vector.shape_cast %4 : vector<1x128xf32> to vector<128xf32>
    %6 = vector.shape_cast %5 : vector<128xf32> to vector<1x128xf32>
    %7 = vector.broadcast %6 : vector<1x128xf32> to vector<8x128xf32>
    %8 = arith.addf %3, %7 : vector<8x128xf32>
    %cst_6 = arith.constant 0.000000e+00 : f32
    %9 = vector.broadcast %cst_6 : f32 to vector<8x128xf32>
    %10 = arith.maximumf %8, %9 : vector<8x128xf32>
    %11 = arith.truncf %10 : vector<8x128xf32> to vector<8x128xbf16>
    %c1 = arith.constant 1 : index
    %c0_7 = arith.constant 0 : index
    %c0_8 = arith.constant 0 : index
    %12 = vector.load %arg2[%c1, %c0_7, %c0_8] : memref<5x128x128xbf16, #tpu.memory_space<vmem>>, vector<1x128x128xbf16>
    %13 = vector.shape_cast %12 : vector<1x128x128xbf16> to vector<128x128xbf16>
    %cst_9 = arith.constant dense<0.000000e+00> : vector<8x128xf32>
    %14 = tpu.matmul %11, %13, %cst_9 {dimension_numbers = #tpu.dot_dimension_numbers<[1], [0], [0], [1], [0, 0, 1, 1], [], []>} : vector<8x128xbf16>, vector<128x128xbf16>, vector<8x128xf32> -> vector<8x128xf32>
    %c1_10 = arith.constant 1 : index
    %c0_11 = arith.constant 0 : index
    %15 = vector.load %arg3[%c1_10, %c0_11] : memref<5x128xf32, #tpu.memory_space<vmem>>, vector<1x128xf32>
    %16 = vector.shape_cast %15 : vector<1x128xf32> to vector<128xf32>
    %17 = vector.shape_cast %16 : vector<128xf32> to vector<1x128xf32>
    %18 = vector.broadcast %17 : vector<1x128xf32> to vector<8x128xf32>
    %19 = arith.addf %14, %18 : vector<8x128xf32>
    %cst_12 = arith.constant 0.000000e+00 : f32
    %20 = vector.broadcast %cst_12 : f32 to vector<8x128xf32>
    %21 = arith.maximumf %19, %20 : vector<8x128xf32>
    %22 = arith.truncf %21 : vector<8x128xf32> to vector<8x128xbf16>
    %c2 = arith.constant 2 : index
    %c0_13 = arith.constant 0 : index
    %c0_14 = arith.constant 0 : index
    %23 = vector.load %arg2[%c2, %c0_13, %c0_14] : memref<5x128x128xbf16, #tpu.memory_space<vmem>>, vector<1x128x128xbf16>
    %24 = vector.shape_cast %23 : vector<1x128x128xbf16> to vector<128x128xbf16>
    %cst_15 = arith.constant dense<0.000000e+00> : vector<8x128xf32>
    %25 = tpu.matmul %22, %24, %cst_15 {dimension_numbers = #tpu.dot_dimension_numbers<[1], [0], [0], [1], [0, 0, 1, 1], [], []>} : vector<8x128xbf16>, vector<128x128xbf16>, vector<8x128xf32> -> vector<8x128xf32>
    %c2_16 = arith.constant 2 : index
    %c0_17 = arith.constant 0 : index
    %26 = vector.load %arg3[%c2_16, %c0_17] : memref<5x128xf32, #tpu.memory_space<vmem>>, vector<1x128xf32>
    %27 = vector.shape_cast %26 : vector<1x128xf32> to vector<128xf32>
    %28 = vector.shape_cast %27 : vector<128xf32> to vector<1x128xf32>
    %29 = vector.broadcast %28 : vector<1x128xf32> to vector<8x128xf32>
    %30 = arith.addf %25, %29 : vector<8x128xf32>
    %cst_18 = arith.constant 0.000000e+00 : f32
    %31 = vector.broadcast %cst_18 : f32 to vector<8x128xf32>
    %32 = arith.maximumf %30, %31 : vector<8x128xf32>
    %33 = arith.truncf %32 : vector<8x128xf32> to vector<8x128xbf16>
    %c3 = arith.constant 3 : index
    %c0_19 = arith.constant 0 : index
    %c0_20 = arith.constant 0 : index
    %34 = vector.load %arg2[%c3, %c0_19, %c0_20] : memref<5x128x128xbf16, #tpu.memory_space<vmem>>, vector<1x128x128xbf16>
    %35 = vector.shape_cast %34 : vector<1x128x128xbf16> to vector<128x128xbf16>
    %cst_21 = arith.constant dense<0.000000e+00> : vector<8x128xf32>
    %36 = tpu.matmul %33, %35, %cst_21 {dimension_numbers = #tpu.dot_dimension_numbers<[1], [0], [0], [1], [0, 0, 1, 1], [], []>} : vector<8x128xbf16>, vector<128x128xbf16>, vector<8x128xf32> -> vector<8x128xf32>
    %c3_22 = arith.constant 3 : index
    %c0_23 = arith.constant 0 : index
    %37 = vector.load %arg3[%c3_22, %c0_23] : memref<5x128xf32, #tpu.memory_space<vmem>>, vector<1x128xf32>
    %38 = vector.shape_cast %37 : vector<1x128xf32> to vector<128xf32>
    %39 = vector.shape_cast %38 : vector<128xf32> to vector<1x128xf32>
    %40 = vector.broadcast %39 : vector<1x128xf32> to vector<8x128xf32>
    %41 = arith.addf %36, %40 : vector<8x128xf32>
    %cst_24 = arith.constant 0.000000e+00 : f32
    %42 = vector.broadcast %cst_24 : f32 to vector<8x128xf32>
    %43 = arith.maximumf %41, %42 : vector<8x128xf32>
    %44 = arith.truncf %43 : vector<8x128xf32> to vector<8x128xbf16>
    %c4 = arith.constant 4 : index
    %c0_25 = arith.constant 0 : index
    %c0_26 = arith.constant 0 : index
    %45 = vector.load %arg2[%c4, %c0_25, %c0_26] : memref<5x128x128xbf16, #tpu.memory_space<vmem>>, vector<1x128x128xbf16>
    %46 = vector.shape_cast %45 : vector<1x128x128xbf16> to vector<128x128xbf16>
    %cst_27 = arith.constant dense<0.000000e+00> : vector<8x128xf32>
    %47 = tpu.matmul %44, %46, %cst_27 {dimension_numbers = #tpu.dot_dimension_numbers<[1], [0], [0], [1], [0, 0, 1, 1], [], []>} : vector<8x128xbf16>, vector<128x128xbf16>, vector<8x128xf32> -> vector<8x128xf32>
    %c4_28 = arith.constant 4 : index
    %c0_29 = arith.constant 0 : index
    %48 = vector.load %arg3[%c4_28, %c0_29] : memref<5x128xf32, #tpu.memory_space<vmem>>, vector<1x128xf32>
    %49 = vector.shape_cast %48 : vector<1x128xf32> to vector<128xf32>
    %50 = vector.shape_cast %49 : vector<128xf32> to vector<1x128xf32>
    %51 = vector.broadcast %50 : vector<1x128xf32> to vector<8x128xf32>
    %52 = arith.addf %47, %51 : vector<8x128xf32>
    %cst_30 = arith.constant 0.000000e+00 : f32
    %53 = vector.broadcast %cst_30 : f32 to vector<8x128xf32>
    %54 = arith.maximumf %52, %53 : vector<8x128xf32>
    %c0_31 = arith.constant 0 : index
    %c0_32 = arith.constant 0 : index
    %55 = vector.load %arg4[%c0_31, %c0_32] : memref<8x128xf32, #tpu.memory_space<vmem>>, vector<8x128xf32>
    tpu.vector_store %arg4[%c0_31, %c0_32], %54 {strides = array<i32>} : memref<8x128xf32, #tpu.memory_space<vmem>>, vector<8x128xf32>,
    return
  }
  func.func @transform_0(%arg0: i32) -> (i32, i32) {
    %c0_i32 = arith.constant 0 : i32
    %c0_i32_0 = arith.constant 0 : i32
    return %arg0, %c0_i32 : i32, i32
  }
  func.func @transform_1(%arg0: i32) -> (i32, i32, i32) {
    %c0_i32 = arith.constant 0 : i32
    %c0_i32_0 = arith.constant 0 : i32
    %c0_i32_1 = arith.constant 0 : i32
    %c0_i32_2 = arith.constant 0 : i32
    return %c0_i32, %c0_i32_0, %c0_i32_1 : i32, i32, i32
  }
  func.func @transform_2(%arg0: i32) -> (i32, i32) {
    %c0_i32 = arith.constant 0 : i32
    %c0_i32_0 = arith.constant 0 : i32
    %c0_i32_1 = arith.constant 0 : i32
    return %c0_i32, %c0_i32_0 : i32, i32
  }
  func.func @transform_3(%arg0: i32) -> (i32, i32) {
    %c0_i32 = arith.constant 0 : i32
    %c0_i32_0 = arith.constant 0 : i32
    return %arg0, %c0_i32 : i32, i32
  }
}

</mosaic_0001>

<llo_original>
// kernel: tpu_custom_call.1
$region0: #{tpu_custom_call.1}
  #allocation0 [shape = 'u32[]', space=smem, size = 0x4, offset = 0x4, fixed_abs, tag = 'smem constant byte address 0x4 - core index']
  #allocation1 [shape = 'u32[144,128]{1,0:T(1,128)}', space=vmem, size = 0x12000, scoped, tag = 'internal scratch']
  %s0 = inlined_call_operand.hbm [shape: bf16[8,128], index: 0, kind: input, shape index: {}]
  %s1 = inlined_call_operand.hbm [shape: bf16[5,128,128], index: 1, kind: input, shape index: {}]
  %s2 = inlined_call_operand.hbm [shape: f32[5,128], index: 2, kind: input, shape index: {}]
  %s3 = inlined_call_operand.hbm [shape: f32[8,128], index: 3, kind: output, shape index: {}]
  %s4 = sld [smem:[#allocation0]]
  $region34: #{tpu_custom_call.1} parent=0
    _
  %s6 = ssub.s32 1, %s4
  %s7 = scalar_select 0, %s6, %s4
  $region1: #{tpu_custom_call.1} parent=0
    #allocation2 [shape = 'u8[2048]{0}', space=vmem, size = 0x800, scoped, tag = 'input window, operand 0, single buffered']
    #allocation3 [shape = 's32[1]{0}', space=sflag, size = 0x4, scoped, tag = 'scoped memory for tpu_custom_call.1']
    #allocation4 [shape = 's32[1]{0}', space=sflag, size = 0x4, scoped, tag = 'scoped memory for tpu_custom_call.1']
    #allocation5 [shape = 'u8[163840]{0}', space=vmem, size = 0x28000, scoped, tag = 'input window, operand 1, single buffered']
    #allocation6 [shape = 's32[1]{0}', space=sflag, size = 0x4, scoped, tag = 'scoped memory for tpu_custom_call.1']
    #allocation7 [shape = 'u8[4096]{0}', space=vmem, size = 0x1000, scoped, tag = 'input window, operand 2, single buffered']
    #allocation8 [shape = 'u8[4096]{0}', space=vmem, size = 0x1000, scoped, tag = 'output window, operand 0, single buffered']
    %8 = vsyncpa [#allocation3], 0
    %9 = vsyncpa [#allocation6], 0
    %10 = vsyncpa [#allocation4], 0
    // Predicated region
    $region2: #{tpu_custom_call.1} parent=1 // pred_check
      _
    $region3: #{tpu_custom_call.1} parent=1 // pred_check_branch
      %12 = sbr.rel (0) target = $region5
    $region4: #{tpu_custom_call.1} parent=1 // pred_region
      %s14 = ssub.s32 64, 64
      %15 = vsyncadd [#allocation3], %s14
      %s17 = sshll.u32 [#allocation2], 4
      %s18 = int_to_ptr.vmem [resolvable:$true] %s17
      %20 = dma.hbm_to_vmem [thread:$0]  %s0, 64, %s18, [#allocation3]
    $region5: #{tpu_custom_call.1} parent=1 // pred_fallthru
      _
    // Predicated region
    $region6: #{tpu_custom_call.1} parent=1 // pred_check
      _
    $region7: #{tpu_custom_call.1} parent=1 // pred_check_branch
      %22 = sbr.rel (0) target = $region9
    $region8: #{tpu_custom_call.1} parent=1 // pred_region
      %s24 = ssub.s32 5120, 5120
      %25 = vsyncadd [#allocation6], %s24
      %s26 = sshll.u32 [#allocation5], 4
      %s27 = int_to_ptr.vmem [resolvable:$true] %s26
      %32 = dma.hbm_to_vmem [thread:$0]  %s1, 5120, %s27, [#allocation6], 64, 64, 4
    $region9: #{tpu_custom_call.1} parent=1 // pred_fallthru
      _
    // Predicated region
    $region10: #{tpu_custom_call.1} parent=1 // pred_check
      _
    $region11: #{tpu_custom_call.1} parent=1 // pred_check_branch
      %34 = sbr.rel (0) target = $region13
    $region12: #{tpu_custom_call.1} parent=1 // pred_region
      %s36 = ssub.s32 128, 128
      %37 = vsyncadd [#allocation6], %s36
      %s39 = sshll.u32 [#allocation7], 4
      %s40 = int_to_ptr.vmem [resolvable:$true] %s39
      %42 = dma.hbm_to_vmem [thread:$0]  %s2, 128, %s40, [#allocation6]
    $region13: #{tpu_custom_call.1} parent=1 // pred_fallthru
      _
    // Predicated region
    $region14: #{tpu_custom_call.1} parent=1 // pred_check
      _
    $region15: #{tpu_custom_call.1} parent=1 // pred_check_branch
      %44 = sbr.rel (0) target = $region17
    $region16: #{tpu_custom_call.1} parent=1 // pred_region
      %45 = dma.done [#allocation3], 64
    $region17: #{tpu_custom_call.1} parent=1 // pred_fallthru
      _
    // Predicated region
    $region18: #{tpu_custom_call.1} parent=1 // pred_check
      _
    $region19: #{tpu_custom_call.1} parent=1 // pred_check_branch
      %47 = sbr.rel (0) target = $region21
    $region20: #{tpu_custom_call.1} parent=1 // pred_region
      %48 = dma.done [#allocation6], 5120
    $region21: #{tpu_custom_call.1} parent=1 // pred_fallthru
      _
    // Predicated region
    $region22: #{tpu_custom_call.1} parent=1 // pred_check
      _
    $region23: #{tpu_custom_call.1} parent=1 // pred_check_branch
      %50 = sbr.rel (0) target = $region25
    $region24: #{tpu_custom_call.1} parent=1 // pred_region
      %51 = dma.done [#allocation6], 128
    $region25: #{tpu_custom_call.1} parent=1 // pred_fallthru
      _
    %v53 = vld [vmem:[#allocation2] sm:$0xf]
    %v54 = vld [vmem:[#allocation5] sm:$0xf]
    %v55 = vld [vmem:[#allocation5 + $0x4] sm:$0xf]
    %v56 = vld [vmem:[#allocation5 + $0x8] sm:$0xf]
    %v57 = vld [vmem:[#allocation5 + $0xc] sm:$0xf]
    %v58 = vld [vmem:[#allocation5 + $0x10] sm:$0xf]
    %v59 = vld [vmem:[#allocation5 + $0x14] sm:$0xf]
    %v60 = vld [vmem:[#allocation5 + $0x18] sm:$0xf]
    %v61 = vld [vmem:[#allocation5 + $0x1c] sm:$0xf]
    %v62 = vld [vmem:[#allocation5 + $0x20] sm:$0xf]
    %v63 = vld [vmem:[#allocation5 + $0x24] sm:$0xf]
    %v64 = vld [vmem:[#allocation5 + $0x28] sm:$0xf]
    %v65 = vld [vmem:[#allocation5 + $0x2c] sm:$0xf]
    %v66 = vld [vmem:[#allocation5 + $0x30] sm:$0xf]
    %v67 = vld [vmem:[#allocation5 + $0x34] sm:$0xf]
    %v68 = vld [vmem:[#allocation5 + $0x38] sm:$0xf]
    %v69 = vld [vmem:[#allocation5 + $0x3c] sm:$0xf]
    %v70 = vld [vmem:[#allocation7] sm:$0x1]
    %v71 = vlaneseq
    %v72 = vshrl.u32 %v71, 7
    %v73 = vsub.s32 0, %v72
    %v74 = vrot.slane %v70, %v73
    %v91 = vunpack.c.l.b16 %v54
    %v92 = vunpack.c.l.b16 %v55
    %v93 = vunpack.c.l.b16 %v56
    %v94 = vunpack.c.l.b16 %v57
    %v95 = vunpack.c.l.b16 %v58
    %v96 = vunpack.c.l.b16 %v59
    %v97 = vunpack.c.l.b16 %v60
    %v98 = vunpack.c.l.b16 %v61
    %v99 = vunpack.c.l.b16 %v62
    %v100 = vunpack.c.l.b16 %v63
    %v101 = vunpack.c.l.b16 %v64
    %v102 = vunpack.c.l.b16 %v65
    %v103 = vunpack.c.l.b16 %v66
    %v104 = vunpack.c.l.b16 %v67
    %v105 = vunpack.c.l.b16 %v68
    %v106 = vunpack.c.l.b16 %v69
    %v107 = vpack.c.b16 %v92, %v91
    %v108 = vpack.c.b16 %v94, %v93
    %v109 = vpack.c.b16 %v96, %v95
    %v110 = vpack.c.b16 %v98, %v97
    %v111 = vpack.c.b16 %v100, %v99
    %v112 = vpack.c.b16 %v102, %v101
    %v113 = vpack.c.b16 %v104, %v103
    %v114 = vpack.c.b16 %v106, %v105
    %123 = vmatprep.subr.bf16.mxu0 0
    %124 = vmatpush1.bf16.msra.mxu0 %v114
    %125 = vmatprep.subr.bf16.mxu0 0
    %126 = vmatpush1.bf16.msra.mxu0 %v113
    %127 = vmatprep.subr.bf16.mxu0 0
    %128 = vmatpush1.bf16.msra.mxu0 %v112
    %129 = vmatprep.subr.bf16.mxu0 0
    %130 = vmatpush1.bf16.msra.mxu0 %v111
    %131 = vmatprep.subr.bf16.mxu0 0
    %132 = vmatpush1.bf16.msra.mxu0 %v110
    %133 = vmatprep.subr.bf16.mxu0 0
    %134 = vmatpush1.bf16.msra.mxu0 %v109
    %135 = vmatprep.subr.bf16.mxu0 0
    %136 = vmatpush1.bf16.msra.mxu0 %v108
    %137 = vmatprep.subr.bf16.mxu0 0
    %138 = vmatpush1.bf16.msra.mxu0 %v107
    %139 = vmatprep.subr.bf16.mxu0 0
    %140 = vmatpush2.bf16.msra.mxu0 0
    %141 = vmatprep.subr.bf16.mxu0 0
    %142 = vmatpush2.bf16.msra.mxu0 0
    %143 = vmatprep.subr.bf16.mxu0 0
    %144 = vmatpush2.bf16.msra.mxu0 0
    %145 = vmatprep.subr.bf16.mxu0 0
    %146 = vmatpush2.bf16.msra.mxu0 0
    %147 = vmatprep.subr.bf16.mxu0 0
    %148 = vmatpush2.bf16.msra.mxu0 0
    %149 = vmatprep.subr.bf16.mxu0 0
    %150 = vmatpush2.bf16.msra.mxu0 0
    %151 = vmatprep.subr.bf16.mxu0 0
    %152 = vmatpush2.bf16.msra.mxu0 0
    %153 = vmatprep.subr.bf16.mxu0 0
    %154 = vmatpush2.bf16.msra.mxu0 0
    %155 = vmatprep.mubr.bf16.mxu0 0
    %156 = vmatmul.mubr.bf16.gmra.mxu0 %v53
    %v157 = vpop.f32.mrf.mxu0
    %v158 = vadd.f32 %v74, %v157
    %v159 = vpop.f32.mrf.mxu0
    %v160 = vpop.f32.mrf.mxu0
    %v161 = vpop.f32.mrf.mxu0
    %162 = vdwg.mxu0
    %v163 = vmax.f32 %v158, 0.0
    %v164 = vpack.c.bf16 %v163, %v163
    %s165 = scalar_lea.vmem [#allocation5], 64
    %v166 = vld [vmem:[%s165] sm:$0xf]
    %v167 = vld [vmem:[%s165 + $0x4] sm:$0xf]
    %v168 = vld [vmem:[%s165 + $0x8] sm:$0xf]
    %v169 = vld [vmem:[%s165 + $0xc] sm:$0xf]
    %v170 = vld [vmem:[%s165 + $0x10] sm:$0xf]
    %v171 = vld [vmem:[%s165 + $0x14] sm:$0xf]
    %v172 = vld [vmem:[%s165 + $0x18] sm:$0xf]
    %v173 = vld [vmem:[%s165 + $0x1c] sm:$0xf]
    %v174 = vld [vmem:[%s165 + $0x20] sm:$0xf]
    %v175 = vld [vmem:[%s165 + $0x24] sm:$0xf]
    %v176 = vld [vmem:[%s165 + $0x28] sm:$0xf]
    %v177 = vld [vmem:[%s165 + $0x2c] sm:$0xf]
    %v178 = vld [vmem:[%s165 + $0x30] sm:$0xf]
    %v179 = vld [vmem:[%s165 + $0x34] sm:$0xf]
    %v180 = vld [vmem:[%s165 + $0x38] sm:$0xf]
    %v181 = vld [vmem:[%s165 + $0x3c] sm:$0xf]
    %v182 = vld [vmem:[#allocation7 + $0x1] sm:$0x1]
    %v183 = vlaneseq
    %v184 = vshrl.u32 %v183, 7
    %v185 = vsub.s32 0, %v184
    %v186 = vrot.slane %v182, %v185
    %v203 = vunpack.c.l.b16 %v166
    %v204 = vunpack.c.l.b16 %v167
    %v205 = vunpack.c.l.b16 %v168
    %v206 = vunpack.c.l.b16 %v169
    %v207 = vunpack.c.l.b16 %v170
    %v208 = vunpack.c.l.b16 %v171
    %v209 = vunpack.c.l.b16 %v172
    %v210 = vunpack.c.l.b16 %v173
    %v211 = vunpack.c.l.b16 %v174
    %v212 = vunpack.c.l.b16 %v175
    %v213 = vunpack.c.l.b16 %v176
    %v214 = vunpack.c.l.b16 %v177
    %v215 = vunpack.c.l.b16 %v178
    %v216 = vunpack.c.l.b16 %v179
    %v217 = vunpack.c.l.b16 %v180
    %v218 = vunpack.c.l.b16 %v181
    %v219 = vpack.c.b16 %v204, %v203
    %v220 = vpack.c.b16 %v206, %v205
    %v221 = vpack.c.b16 %v208, %v207
    %v222 = vpack.c.b16 %v210, %v209
    %v223 = vpack.c.b16 %v212, %v211
    %v224 = vpack.c.b16 %v214, %v213
    %v225 = vpack.c.b16 %v216, %v215
    %v226 = vpack.c.b16 %v218, %v217
    %235 = vmatprep.subr.bf16.mxu0 0
    %236 = vmatpush1.bf16.msra.mxu0 %v226
    %237 = vmatprep.subr.bf16.mxu0 0
    %238 = vmatpush1.bf16.msra.mxu0 %v225
    %239 = vmatprep.subr.bf16.mxu0 0
    %240 = vmatpush1.bf16.msra.mxu0 %v224
    %241 = vmatprep.subr.bf16.mxu0 0
    %242 = vmatpush1.bf16.msra.mxu0 %v223
    %243 = vmatprep.subr.bf16.mxu0 0
    %244 = vmatpush1.bf16.msra.mxu0 %v222
    %245 = vmatprep.subr.bf16.mxu0 0
    %246 = vmatpush1.bf16.msra.mxu0 %v221
    %247 = vmatprep.subr.bf16.mxu0 0
    %248 = vmatpush1.bf16.msra.mxu0 %v220
    %249 = vmatprep.subr.bf16.mxu0 0
    %250 = vmatpush1.bf16.msra.mxu0 %v219
    %251 = vmatprep.subr.bf16.mxu0 0
    %252 = vmatpush2.bf16.msra.mxu0 0
    %253 = vmatprep.subr.bf16.mxu0 0
    %254 = vmatpush2.bf16.msra.mxu0 0
    %255 = vmatprep.subr.bf16.mxu0 0
    %256 = vmatpush2.bf16.msra.mxu0 0
    %257 = vmatprep.subr.bf16.mxu0 0
    %258 = vmatpush2.bf16.msra.mxu0 0
    %259 = vmatprep.subr.bf16.mxu0 0
    %260 = vmatpush2.bf16.msra.mxu0 0
    %261 = vmatprep.subr.bf16.mxu0 0
    %262 = vmatpush2.bf16.msra.mxu0 0
    %263 = vmatprep.subr.bf16.mxu0 0
    %264 = vmatpush2.bf16.msra.mxu0 0
    %265 = vmatprep.subr.bf16.mxu0 0
    %266 = vmatpush2.bf16.msra.mxu0 0
    %267 = vmatprep.mubr.bf16.mxu0 0
    %268 = vmatmul.mubr.bf16.gmra.mxu0 %v164
    %v269 = vpop.f32.mrf.mxu0
    %v270 = vadd.f32 %v186, %v269
    %v271 = vpop.f32.mrf.mxu0
    %v272 = vpop.f32.mrf.mxu0
    %v273 = vpop.f32.mrf.mxu0
    %274 = vdwg.mxu0
    %v275 = vmax.f32 %v270, 0.0
    %v276 = vpack.c.bf16 %v275, %v275
    %s277 = scalar_lea.vmem [#allocation5], 128
    %v278 = vld [vmem:[%s277] sm:$0xf]
    %v279 = vld [vmem:[%s277 + $0x4] sm:$0xf]
    %v280 = vld [vmem:[%s277 + $0x8] sm:$0xf]
    %v281 = vld [vmem:[%s277 + $0xc] sm:$0xf]
    %v282 = vld [vmem:[%s277 + $0x10] sm:$0xf]
    %v283 = vld [vmem:[%s277 + $0x14] sm:$0xf]
    %v284 = vld [vmem:[%s277 + $0x18] sm:$0xf]
    %v285 = vld [vmem:[%s277 + $0x1c] sm:$0xf]
    %v286 = vld [vmem:[%s277 + $0x20] sm:$0xf]
    %v287 = vld [vmem:[%s277 + $0x24] sm:$0xf]
    %v288 = vld [vmem:[%s277 + $0x28] sm:$0xf]
    %v289 = vld [vmem:[%s277 + $0x2c] sm:$0xf]
    %v290 = vld [vmem:[%s277 + $0x30] sm:$0xf]
    %v291 = vld [vmem:[%s277 + $0x34] sm:$0xf]
    %v292 = vld [vmem:[%s277 + $0x38] sm:$0xf]
    %v293 = vld [vmem:[%s277 + $0x3c] sm:$0xf]
    %v294 = vld [vmem:[#allocation7 + $0x2] sm:$0x1]
    %v295 = vlaneseq
    %v296 = vshrl.u32 %v295, 7
    %v297 = vsub.s32 0, %v296
    %v298 = vrot.slane %v294, %v297
    %v315 = vunpack.c.l.b16 %v278
    %v316 = vunpack.c.l.b16 %v279
    %v317 = vunpack.c.l.b16 %v280
    %v318 = vunpack.c.l.b16 %v281
    %v319 = vunpack.c.l.b16 %v282
    %v320 = vunpack.c.l.b16 %v283
    %v321 = vunpack.c.l.b16 %v284
    %v322 = vunpack.c.l.b16 %v285
    %v323 = vunpack.c.l.b16 %v286
    %v324 = vunpack.c.l.b16 %v287
    %v325 = vunpack.c.l.b16 %v288
    %v326 = vunpack.c.l.b16 %v289
    %v327 = vunpack.c.l.b16 %v290
    %v328 = vunpack.c.l.b16 %v291
    %v329 = vunpack.c.l.b16 %v292
    %v330 = vunpack.c.l.b16 %v293
    %v331 = vpack.c.b16 %v316, %v315
    %v332 = vpack.c.b16 %v318, %v317
    %v333 = vpack.c.b16 %v320, %v319
    %v334 = vpack.c.b16 %v322, %v321
    %v335 = vpack.c.b16 %v324, %v323
    %v336 = vpack.c.b16 %v326, %v325
    %v337 = vpack.c.b16 %v328, %v327
    %v338 = vpack.c.b16 %v330, %v329
    %347 = vmatprep.subr.bf16.mxu0 0
    %348 = vmatpush1.bf16.msra.mxu0 %v338
    %349 = vmatprep.subr.bf16.mxu0 0
    %350 = vmatpush1.bf16.msra.mxu0 %v337
    %351 = vmatprep.subr.bf16.mxu0 0
    %352 = vmatpush1.bf16.msra.mxu0 %v336
    %353 = vmatprep.subr.bf16.mxu0 0
    %354 = vmatpush1.bf16.msra.mxu0 %v335
    %355 = vmatprep.subr.bf16.mxu0 0
    %356 = vmatpush1.bf16.msra.mxu0 %v334
    %357 = vmatprep.subr.bf16.mxu0 0
    %358 = vmatpush1.bf16.msra.mxu0 %v333
    %359 = vmatprep.subr.bf16.mxu0 0
    %360 = vmatpush1.bf16.msra.mxu0 %v332
    %361 = vmatprep.subr.bf16.mxu0 0
    %362 = vmatpush1.bf16.msra.mxu0 %v331
    %363 = vmatprep.subr.bf16.mxu0 0
    %364 = vmatpush2.bf16.msra.mxu0 0
    %365 = vmatprep.subr.bf16.mxu0 0
    %366 = vmatpush2.bf16.msra.mxu0 0
    %367 = vmatprep.subr.bf16.mxu0 0
    %368 = vmatpush2.bf16.msra.mxu0 0
    %369 = vmatprep.subr.bf16.mxu0 0
    %370 = vmatpush2.bf16.msra.mxu0 0
    %371 = vmatprep.subr.bf16.mxu0 0
    %372 = vmatpush2.bf16.msra.mxu0 0
    %373 = vmatprep.subr.bf16.mxu0 0
    %374 = vmatpush2.bf16.msra.mxu0 0
    %375 = vmatprep.subr.bf16.mxu0 0
    %376 = vmatpush2.bf16.msra.mxu0 0
    %377 = vmatprep.subr.bf16.mxu0 0
    %378 = vmatpush2.bf16.msra.mxu0 0
    %379 = vmatprep.mubr.bf16.mxu0 0
    %380 = vmatmul.mubr.bf16.gmra.mxu0 %v276
    %v381 = vpop.f32.mrf.mxu0
    %v382 = vadd.f32 %v298, %v381
    %v383 = vpop.f32.mrf.mxu0
    %v384 = vpop.f32.mrf.mxu0
    %v385 = vpop.f32.mrf.mxu0
    %386 = vdwg.mxu0
    %v387 = vmax.f32 %v382, 0.0
    %v388 = vpack.c.bf16 %v387, %v387
    %s389 = scalar_lea.vmem [#allocation5], 192
    %v390 = vld [vmem:[%s389] sm:$0xf]
    %v391 = vld [vmem:[%s389 + $0x4] sm:$0xf]
    %v392 = vld [vmem:[%s389 + $0x8] sm:$0xf]
    %v393 = vld [vmem:[%s389 + $0xc] sm:$0xf]
    %v394 = vld [vmem:[%s389 + $0x10] sm:$0xf]
    %v395 = vld [vmem:[%s389 + $0x14] sm:$0xf]
    %v396 = vld [vmem:[%s389 + $0x18] sm:$0xf]
    %v397 = vld [vmem:[%s389 + $0x1c] sm:$0xf]
    %v398 = vld [vmem:[%s389 + $0x20] sm:$0xf]
    %v399 = vld [vmem:[%s389 + $0x24] sm:$0xf]
    %v400 = vld [vmem:[%s389 + $0x28] sm:$0xf]
    %v401 = vld [vmem:[%s389 + $0x2c] sm:$0xf]
    %v402 = vld [vmem:[%s389 + $0x30] sm:$0xf]
    %v403 = vld [vmem:[%s389 + $0x34] sm:$0xf]
    %v404 = vld [vmem:[%s389 + $0x38] sm:$0xf]
    %v405 = vld [vmem:[%s389 + $0x3c] sm:$0xf]
    %v406 = vld [vmem:[#allocation7 + $0x3] sm:$0x1]
    %v407 = vlaneseq
    %v408 = vshrl.u32 %v407, 7
    %v409 = vsub.s32 0, %v408
    %v410 = vrot.slane %v406, %v409
    %v427 = vunpack.c.l.b16 %v390
    %v428 = vunpack.c.l.b16 %v391
    %v429 = vunpack.c.l.b16 %v392
    %v430 = vunpack.c.l.b16 %v393
    %v431 = vunpack.c.l.b16 %v394
    %v432 = vunpack.c.l.b16 %v395
    %v433 = vunpack.c.l.b16 %v396
    %v434 = vunpack.c.l.b16 %v397
    %v435 = vunpack.c.l.b16 %v398
    %v436 = vunpack.c.l.b16 %v399
    %v437 = vunpack.c.l.b16 %v400
    %v438 = vunpack.c.l.b16 %v401
    %v439 = vunpack.c.l.b16 %v402
    %v440 = vunpack.c.l.b16 %v403
    %v441 = vunpack.c.l.b16 %v404
    %v442 = vunpack.c.l.b16 %v405
    %v443 = vpack.c.b16 %v428, %v427
    %v444 = vpack.c.b16 %v430, %v429
    %v445 = vpack.c.b16 %v432, %v431
    %v446 = vpack.c.b16 %v434, %v433
    %v447 = vpack.c.b16 %v436, %v435
    %v448 = vpack.c.b16 %v438, %v437
    %v449 = vpack.c.b16 %v440, %v439
    %v450 = vpack.c.b16 %v442, %v441
    %459 = vmatprep.subr.bf16.mxu0 0
    %460 = vmatpush1.bf16.msra.mxu0 %v450
    %461 = vmatprep.subr.bf16.mxu0 0
    %462 = vmatpush1.bf16.msra.mxu0 %v449
    %463 = vmatprep.subr.bf16.mxu0 0
    %464 = vmatpush1.bf16.msra.mxu0 %v448
    %465 = vmatprep.subr.bf16.mxu0 0
    %466 = vmatpush1.bf16.msra.mxu0 %v447
    %467 = vmatprep.subr.bf16.mxu0 0
    %468 = vmatpush1.bf16.msra.mxu0 %v446
    %469 = vmatprep.subr.bf16.mxu0 0
    %470 = vmatpush1.bf16.msra.mxu0 %v445
    %471 = vmatprep.subr.bf16.mxu0 0
    %472 = vmatpush1.bf16.msra.mxu0 %v444
    %473 = vmatprep.subr.bf16.mxu0 0
    %474 = vmatpush1.bf16.msra.mxu0 %v443
    %475 = vmatprep.subr.bf16.mxu0 0
    %476 = vmatpush2.bf16.msra.mxu0 0
    %477 = vmatprep.subr.bf16.mxu0 0
    %478 = vmatpush2.bf16.msra.mxu0 0
    %479 = vmatprep.subr.bf16.mxu0 0
    %480 = vmatpush2.bf16.msra.mxu0 0
    %481 = vmatprep.subr.bf16.mxu0 0
    %482 = vmatpush2.bf16.msra.mxu0 0
    %483 = vmatprep.subr.bf16.mxu0 0
    %484 = vmatpush2.bf16.msra.mxu0 0
    %485 = vmatprep.subr.bf16.mxu0 0
    %486 = vmatpush2.bf16.msra.mxu0 0
    %487 = vmatprep.subr.bf16.mxu0 0
    %488 = vmatpush2.bf16.msra.mxu0 0
    %489 = vmatprep.subr.bf16.mxu0 0
    %490 = vmatpush2.bf16.msra.mxu0 0
    %491 = vmatprep.mubr.bf16.mxu0 0
    %492 = vmatmul.mubr.bf16.gmra.mxu0 %v388
    %v493 = vpop.f32.mrf.mxu0
    %v494 = vadd.f32 %v410, %v493
    %v495 = vpop.f32.mrf.mxu0
    %v496 = vpop.f32.mrf.mxu0
    %v497 = vpop.f32.mrf.mxu0
    %498 = vdwg.mxu0
    %v499 = vmax.f32 %v494, 0.0
    %v500 = vpack.c.bf16 %v499, %v499
    %s501 = scalar_lea.vmem [#allocation5], 256
    %v502 = vld [vmem:[%s501] sm:$0xf]
    %v503 = vld [vmem:[%s501 + $0x4] sm:$0xf]
    %v504 = vld [vmem:[%s501 + $0x8] sm:$0xf]
    %v505 = vld [vmem:[%s501 + $0xc] sm:$0xf]
    %v506 = vld [vmem:[%s501 + $0x10] sm:$0xf]
    %v507 = vld [vmem:[%s501 + $0x14] sm:$0xf]
    %v508 = vld [vmem:[%s501 + $0x18] sm:$0xf]
    %v509 = vld [vmem:[%s501 + $0x1c] sm:$0xf]
    %v510 = vld [vmem:[%s501 + $0x20] sm:$0xf]
    %v511 = vld [vmem:[%s501 + $0x24] sm:$0xf]
    %v512 = vld [vmem:[%s501 + $0x28] sm:$0xf]
    %v513 = vld [vmem:[%s501 + $0x2c] sm:$0xf]
    %v514 = vld [vmem:[%s501 + $0x30] sm:$0xf]
    %v515 = vld [vmem:[%s501 + $0x34] sm:$0xf]
    %v516 = vld [vmem:[%s501 + $0x38] sm:$0xf]
    %v517 = vld [vmem:[%s501 + $0x3c] sm:$0xf]
    %v518 = vld [vmem:[#allocation7 + $0x4] sm:$0x1]
    %v519 = vlaneseq
    %v520 = vshrl.u32 %v519, 7
    %v521 = vsub.s32 0, %v520
    %v522 = vrot.slane %v518, %v521
    %v539 = vunpack.c.l.b16 %v502
    %v540 = vunpack.c.l.b16 %v503
    %v541 = vunpack.c.l.b16 %v504
    %v542 = vunpack.c.l.b16 %v505
    %v543 = vunpack.c.l.b16 %v506
    %v544 = vunpack.c.l.b16 %v507
    %v545 = vunpack.c.l.b16 %v508
    %v546 = vunpack.c.l.b16 %v509
    %v547 = vunpack.c.l.b16 %v510
    %v548 = vunpack.c.l.b16 %v511
    %v549 = vunpack.c.l.b16 %v512
    %v550 = vunpack.c.l.b16 %v513
    %v551 = vunpack.c.l.b16 %v514
    %v552 = vunpack.c.l.b16 %v515
    %v553 = vunpack.c.l.b16 %v516
    %v554 = vunpack.c.l.b16 %v517
    %v555 = vpack.c.b16 %v540, %v539
    %v556 = vpack.c.b16 %v542, %v541
    %v557 = vpack.c.b16 %v544, %v543
    %v558 = vpack.c.b16 %v546, %v545
    %v559 = vpack.c.b16 %v548, %v547
    %v560 = vpack.c.b16 %v550, %v549
    %v561 = vpack.c.b16 %v552, %v551
    %v562 = vpack.c.b16 %v554, %v553
    %571 = vmatprep.subr.bf16.mxu0 0
    %572 = vmatpush1.bf16.msra.mxu0 %v562
    %573 = vmatprep.subr.bf16.mxu0 0
    %574 = vmatpush1.bf16.msra.mxu0 %v561
    %575 = vmatprep.subr.bf16.mxu0 0
    %576 = vmatpush1.bf16.msra.mxu0 %v560
    %577 = vmatprep.subr.bf16.mxu0 0
    %578 = vmatpush1.bf16.msra.mxu0 %v559
    %579 = vmatprep.subr.bf16.mxu0 0
    %580 = vmatpush1.bf16.msra.mxu0 %v558
    %581 = vmatprep.subr.bf16.mxu0 0
    %582 = vmatpush1.bf16.msra.mxu0 %v557
    %583 = vmatprep.subr.bf16.mxu0 0
    %584 = vmatpush1.bf16.msra.mxu0 %v556
    %585 = vmatprep.subr.bf16.mxu0 0
    %586 = vmatpush1.bf16.msra.mxu0 %v555
    %587 = vmatprep.subr.bf16.mxu0 0
    %588 = vmatpush2.bf16.msra.mxu0 0
    %589 = vmatprep.subr.bf16.mxu0 0
    %590 = vmatpush2.bf16.msra.mxu0 0
    %591 = vmatprep.subr.bf16.mxu0 0
    %592 = vmatpush2.bf16.msra.mxu0 0
    %593 = vmatprep.subr.bf16.mxu0 0
    %594 = vmatpush2.bf16.msra.mxu0 0
    %595 = vmatprep.subr.bf16.mxu0 0
    %596 = vmatpush2.bf16.msra.mxu0 0
    %597 = vmatprep.subr.bf16.mxu0 0
    %598 = vmatpush2.bf16.msra.mxu0 0
    %599 = vmatprep.subr.bf16.mxu0 0
    %600 = vmatpush2.bf16.msra.mxu0 0
    %601 = vmatprep.subr.bf16.mxu0 0
    %602 = vmatpush2.bf16.msra.mxu0 0
    %603 = vmatprep.mubr.bf16.mxu0 0
    %604 = vmatmul.mubr.bf16.gmra.mxu0 %v500
    %v605 = vpop.f32.mrf.mxu0
    %v606 = vadd.f32 %v522, %v605
    %v607 = vpop.f32.mrf.mxu0
    %v608 = vpop.f32.mrf.mxu0
    %v609 = vpop.f32.mrf.mxu0
    %610 = vdwg.mxu0
    %v611 = vmax.f32 %v606, 0.0
    %612 = vst [vmem:[#allocation8] sm:$0xff] %v611
    // Predicated region
    $region26: #{tpu_custom_call.1} parent=1 // pred_check
      _
    $region27: #{tpu_custom_call.1} parent=1 // pred_check_branch
      %614 = sbr.rel (0) target = $region29
    $region28: #{tpu_custom_call.1} parent=1 // pred_region
      %s616 = ssub.s32 128, 128
      %617 = vsyncadd [#allocation4], %s616
      %s619 = sshll.u32 [#allocation8], 4
      %s620 = int_to_ptr.vmem [resolvable:$true] %s619
      %622 = dma.vmem_to_hbm [thread:$0]  %s620, 128, %s3, [#allocation4]
    $region29: #{tpu_custom_call.1} parent=1 // pred_fallthru
      _
    // Predicated region
    $region30: #{tpu_custom_call.1} parent=1 // pred_check
      _
    $region31: #{tpu_custom_call.1} parent=1 // pred_check_branch
      %624 = sbr.rel (0) target = $region33
    $region32: #{tpu_custom_call.1} parent=1 // pred_region
      %625 = dma.done [#allocation4], 128
    $region33: #{tpu_custom_call.1} parent=1 // pred_fallthru
      _
    %626 = vsyncpa [#allocation3], 1
    %627 = vsyncpa [#allocation6], 1
    %628 = vsyncpa [#allocation4], 1

</llo_original>
